<compile_context>
chip_gen: v5e
topology: v5e:2x2
jax: 0.10.0
libtpu: 0.0.40
codegen_flags: <defaults>
</compile_context>

<pallas_src>
import functools
import math

import jax
import jax.numpy as jnp
from jax.experimental import pallas as pl
from jax.experimental.pallas import tpu as pltpu

LOG2 = math.log(2.0)


def _round_up(v, m):
    return ((v + m - 1) // m) * m


def infograph_kernel(gid_ref, x_ref, gt_ref,
                     w1_ref, b1_ref, w2_ref, b2_ref, wo_ref, bo_ref,
                     local_ref, part_ref, *, inv_pos, inv_neg):
    x = x_ref[...]                                          # [TN, in_dim] f32

    # ---- FeedforwardNetwork (local_d), output layer fused into one matmul ----
    h = jnp.maximum(
        jnp.dot(x, w1_ref[...], preferred_element_type=jnp.float32) + b1_ref[...], 0.0)
    h = jnp.maximum(
        jnp.dot(h, w2_ref[...], preferred_element_type=jnp.float32) + b2_ref[...], 0.0)
    hx = jnp.concatenate([h, x], axis=-1)                   # [TN, hid+in]
    l_enc = jnp.dot(hx, wo_ref[...], preferred_element_type=jnp.float32) + bo_ref[...]
    local_ref[...] = l_enc                                  # lane-dense [TN, out_pad]

    # ---- Jensen-Shannon MI estimator (local_global_loss_) ----
    res = jnp.dot(l_enc, gt_ref[...], preferred_element_type=jnp.float32)  # [TN, G]
    tn, g = res.shape
    gid = gid_ref[...]                                      # [TN, 1] int32 (-1 = pad row)
    cols = jax.lax.broadcasted_iota(jnp.int32, (tn, g), 1)
    pos = cols == gid
    valid = gid >= 0

    # softplus(-res), computed once (stable form), shared by pos/neg branches.
    sp = jnp.maximum(-res, 0.0) + jnp.log1p(jnp.exp(-jnp.abs(res)))
    elt = jnp.where(pos, (sp - LOG2) * inv_pos,             # -(E_pos term)/N
                    (sp + res - LOG2) * inv_neg)            #  (E_neg term)/(N*(G-1))
    elt = jnp.where(valid, elt, 0.0)
    total = jnp.sum(elt)

    # Per-tile partial sum, written as a lane-dense (8,128) slab (safe block shape,
    # unmasked stores, disjoint per grid step -> compatible with "parallel").
    part_ref[...] = jnp.full((8, 128), total, dtype=jnp.float32)


def infograph_forward(graph_id, x_local, g_enc, params, *, tile_n=256):
    """graph_id: [N] int32, x_local: [N,in_dim], g_enc: [G,out_dim]."""
    N, in_dim = x_local.shape
    G, out_dim = g_enc.shape
    w1, b1, w2, b2, w3, b3, wj, bj = params
    hid = w1.shape[1]

    x_local = x_local.astype(jnp.float32)
    graph_id = graph_id.reshape(N, 1).astype(jnp.int32)

    # ---- one-time wrapper-side prep (layout plumbing stays out of the kernel) ----
    out_pad = _round_up(out_dim, 128)                       # lane-dense local_h stores
    wo = jnp.concatenate([w3, wj], axis=0)                  # [hid+in, out]
    wo = jnp.pad(wo, ((0, 0), (0, out_pad - out_dim)))
    bo = jnp.pad(b3 + bj, ((0, 0), (0, out_pad - out_dim)))
    gt = jnp.pad(g_enc.astype(jnp.float32).T, ((0, out_pad - out_dim), (0, 0)))  # [out_pad, G]

    # ---- row tiling (multiple of 8 sublanes; sized well under v7x's 64 MiB VMEM) ----
    tile_n = min(tile_n, _round_up(N, 8))
    n_pad = _round_up(N, tile_n)
    num_tiles = n_pad // tile_n
    x_p = jnp.pad(x_local, ((0, n_pad - N), (0, 0)))
    gid_p = jnp.pad(graph_id, ((0, n_pad - N), (0, 0)), constant_values=-1)

    inv_pos = 1.0 / N
    inv_neg = 1.0 / (N * max(G - 1, 1))                     # guard G == 1 (avoid div-by-zero)

    kernel = functools.partial(infograph_kernel, inv_pos=inv_pos, inv_neg=inv_neg)

    resident = lambda i: (0, 0)
    rowtile = lambda i: (i, 0)

    flops = 2 * N * (in_dim * hid + hid * hid + (hid + in_dim) * out_pad + out_pad * G)
    bytes_accessed = 4 * (n_pad * (in_dim + 1 + out_pad)
                          + in_dim * hid + hid * hid + (hid + in_dim) * out_pad
                          + out_pad * G + num_tiles * 8 * 128)

    local_pad, parts = pl.pallas_call(
        kernel,
        grid=(num_tiles,),
        in_specs=[
            pl.BlockSpec((tile_n, 1), rowtile),             # graph_id (streamed)
            pl.BlockSpec((tile_n, in_dim), rowtile),        # x        (streamed)
            pl.BlockSpec((out_pad, G), resident),           # g_enc.T  (resident)
            pl.BlockSpec((in_dim, hid), resident),          # w1
            pl.BlockSpec((1, hid), resident),               # b1
            pl.BlockSpec((hid, hid), resident),             # w2
            pl.BlockSpec((1, hid), resident),               # b2
            pl.BlockSpec((hid + in_dim, out_pad), resident),  # fused w3|wj
            pl.BlockSpec((1, out_pad), resident),           # fused b3+bj
        ],
        out_specs=(
            pl.BlockSpec((tile_n, out_pad), rowtile),       # local_h (lane-dense)
            pl.BlockSpec((8, 128), rowtile),                # per-tile loss partials
        ),
        out_shape=(
            jax.ShapeDtypeStruct((n_pad, out_pad), jnp.float32),
            jax.ShapeDtypeStruct((num_tiles * 8, 128), jnp.float32),
        ),
        compiler_params=pltpu.CompilerParams(
            dimension_semantics=("parallel",)),
        cost_estimate=pl.CostEstimate(
            flops=flops, transcendentals=2 * N * G, bytes_accessed=bytes_accessed),
    )(gid_p, x_p, gt, w1, b1, w2, b2, wo, bo)

    local_h = local_pad[:N, :out_dim]
    loss = jnp.sum(parts[::8, 0])                           # combine per-tile partials
    return local_h, loss


def init_linear(key, in_dim, out_dim):
    # PyTorch nn.Linear default init: U(-1/sqrt(in), 1/sqrt(in)); stored as [in, out].
    kw, kb = jax.random.split(key)
    bound = 1.0 / math.sqrt(in_dim)
    w = jax.random.uniform(kw, (in_dim, out_dim), jnp.float32, -bound, bound)
    b = jax.random.uniform(kb, (1, out_dim), jnp.float32, -bound, bound)
    return w, b


def reference(graph_id, x, g, params):
    w1, b1, w2, b2, w3, b3, wj, bj = params
    h = jax.nn.relu(x @ w1 + b1)
    h = jax.nn.relu(h @ w2 + b2)
    l_enc = (h @ w3 + b3) + (x @ wj + bj)
    res = l_enc @ g.T
    n_nodes, n_graphs = res.shape
    pos = (jnp.arange(n_graphs)[None, :] == graph_id.reshape(-1, 1)).astype(jnp.float32)
    neg = 1.0 - pos
    sp = jax.nn.softplus
    e_pos = jnp.sum(LOG2 - sp(-(res * pos))) / n_nodes
    e_neg = jnp.sum(sp(-(res * neg)) + res * neg - LOG2) / (n_nodes * (n_graphs - 1))
    return l_enc, e_neg - e_pos


if __name__ == "__main__":
    # Encoder hyper-params implied by InfoGraph.__init__
    n_hidden = 32
    n_layers = 2
    n_mlp_layers = 1
    in_dim = n_hidden * n_layers                 # 64  (concat of intermediate outputs)
    hid_dim = n_hidden                           # 32
    out_dim = n_hidden // (1 << n_mlp_layers)    # 16  (== global embedding dim)

    num_graphs = 2
    nodes_per_graph = 8
    num_nodes = num_graphs * nodes_per_graph     # 16

    key = jax.random.PRNGKey(0)
    k_x, k_g, k1, k2, k3, kj = jax.random.split(key, 6)

    # Synthetic encoder intermediate outputs and graph-level readout.
    x_local = jax.random.normal(k_x, (num_nodes, in_dim), jnp.float32)
    g_enc = jax.random.normal(k_g, (num_graphs, out_dim), jnp.float32)
    graph_id = jnp.repeat(jnp.arange(num_graphs, dtype=jnp.int32), nodes_per_graph)

    # local_d = FeedforwardNetwork(in_dim, hid_dim, out_dim)
    w1, b1 = init_linear(k1, in_dim, hid_dim)
    w2, b2 = init_linear(k2, hid_dim, hid_dim)
    w3, b3 = init_linear(k3, hid_dim, out_dim)
    wj, bj = init_linear(kj, in_dim, out_dim)
    params = (w1, b1, w2, b2, w3, b3, wj, bj)

    local_h, loss = infograph_forward(graph_id, x_local, g_enc, params)
    jax.block_until_ready(loss)

    ref_local, ref_loss = reference(graph_id, x_local, g_enc, params)
    assert jnp.allclose(loss, ref_loss, rtol=1e-4, atol=1e-5), (loss, ref_loss)
    assert jnp.allclose(local_h, ref_local, rtol=1e-4, atol=1e-5)
    assert local_h.shape == (num_nodes, out_dim)

    print("KERNEL_OK")
</pallas_src>

<mosaic_0001>
module attributes {stable_mosaic.version = 11 : i64} {
  func.func @infograph_kernel(%arg0: i32, %arg1: memref<16x1xi32, #tpu.memory_space<vmem>>, %arg2: memref<16x64xf32, #tpu.memory_space<vmem>>, %arg3: memref<128x2xf32, #tpu.memory_space<vmem>>, %arg4: memref<64x32xf32, #tpu.memory_space<vmem>>, %arg5: memref<1x32xf32, #tpu.memory_space<vmem>>, %arg6: memref<32x32xf32, #tpu.memory_space<vmem>>, %arg7: memref<1x32xf32, #tpu.memory_space<vmem>>, %arg8: memref<96x128xf32, #tpu.memory_space<vmem>>, %arg9: memref<1x128xf32, #tpu.memory_space<vmem>>, %arg10: memref<16x128xf32, #tpu.memory_space<vmem>>, %arg11: memref<8x128xf32, #tpu.memory_space<vmem>>) attributes {dimension_semantics = [#tpu.dimension_semantics<parallel>], iteration_bounds = array<i64: 1>, scalar_prefetch = 0 : i64, scratch_operands = 0 : i64, tpu.core_type = #tpu.core_type<tc>, window_params = [{transform_indices = @transform_0, window_bounds = array<i64: 16, 1>}, {transform_indices = @transform_1, window_bounds = array<i64: 16, 64>}, {pipeline_mode = #tpu.pipeline_mode<synchronous>, transform_indices = @transform_2, window_bounds = array<i64: 128, 2>}, {pipeline_mode = #tpu.pipeline_mode<synchronous>, transform_indices = @transform_3, window_bounds = array<i64: 64, 32>}, {pipeline_mode = #tpu.pipeline_mode<synchronous>, transform_indices = @transform_4, window_bounds = array<i64: 1, 32>}, {pipeline_mode = #tpu.pipeline_mode<synchronous>, transform_indices = @transform_5, window_bounds = array<i64: 32, 32>}, {pipeline_mode = #tpu.pipeline_mode<synchronous>, transform_indices = @transform_6, window_bounds = array<i64: 1, 32>}, {pipeline_mode = #tpu.pipeline_mode<synchronous>, transform_indices = @transform_7, window_bounds = array<i64: 96, 128>}, {pipeline_mode = #tpu.pipeline_mode<synchronous>, transform_indices = @transform_8, window_bounds = array<i64: 1, 128>}, {transform_indices = @transform_9, window_bounds = array<i64: 16, 128>}, {transform_indices = @transform_10, window_bounds = array<i64: 8, 128>}]} {
    %c0 = arith.constant 0 : index
    %c0_0 = arith.constant 0 : index
    %0 = vector.load %arg2[%c0, %c0_0] : memref<16x64xf32, #tpu.memory_space<vmem>>, vector<16x64xf32>
    %c0_1 = arith.constant 0 : index
    %c0_2 = arith.constant 0 : index
    %1 = vector.load %arg4[%c0_1, %c0_2] : memref<64x32xf32, #tpu.memory_space<vmem>>, vector<64x32xf32>
    %cst = arith.constant dense<0.000000e+00> : vector<16x32xf32>
    %2 = tpu.matmul %0, %1, %cst {dimension_numbers = #tpu.dot_dimension_numbers<[1], [0], [0], [1], [0, 0, 1, 1], [], []>} : vector<16x64xf32>, vector<64x32xf32>, vector<16x32xf32> -> vector<16x32xf32>
    %c0_3 = arith.constant 0 : index
    %c0_4 = arith.constant 0 : index
    %3 = vector.load %arg5[%c0_3, %c0_4] : memref<1x32xf32, #tpu.memory_space<vmem>>, vector<1x32xf32>
    %4 = vector.broadcast %3 : vector<1x32xf32> to vector<16x32xf32>
    %5 = arith.addf %2, %4 : vector<16x32xf32>
    %cst_5 = arith.constant 0.000000e+00 : f32
    %6 = vector.broadcast %cst_5 : f32 to vector<16x32xf32>
    %7 = arith.maximumf %5, %6 : vector<16x32xf32>
    %c0_6 = arith.constant 0 : index
    %c0_7 = arith.constant 0 : index
    %8 = vector.load %arg6[%c0_6, %c0_7] : memref<32x32xf32, #tpu.memory_space<vmem>>, vector<32x32xf32>
    %cst_8 = arith.constant dense<0.000000e+00> : vector<16x32xf32>
    %9 = tpu.matmul %7, %8, %cst_8 {dimension_numbers = #tpu.dot_dimension_numbers<[1], [0], [0], [1], [0, 0, 1, 1], [], []>} : vector<16x32xf32>, vector<32x32xf32>, vector<16x32xf32> -> vector<16x32xf32>
    %c0_9 = arith.constant 0 : index
    %c0_10 = arith.constant 0 : index
    %10 = vector.load %arg7[%c0_9, %c0_10] : memref<1x32xf32, #tpu.memory_space<vmem>>, vector<1x32xf32>
    %11 = vector.broadcast %10 : vector<1x32xf32> to vector<16x32xf32>
    %12 = arith.addf %9, %11 : vector<16x32xf32>
    %cst_11 = arith.constant 0.000000e+00 : f32
    %13 = vector.broadcast %cst_11 : f32 to vector<16x32xf32>
    %14 = arith.maximumf %12, %13 : vector<16x32xf32>
    %15 = tpu.concatenate %14, %0 in 1 : vector<16x32xf32>, vector<16x64xf32> -> vector<16x96xf32>
    %c0_12 = arith.constant 0 : index
    %c0_13 = arith.constant 0 : index
    %16 = vector.load %arg8[%c0_12, %c0_13] : memref<96x128xf32, #tpu.memory_space<vmem>>, vector<96x128xf32>
    %cst_14 = arith.constant dense<0.000000e+00> : vector<16x128xf32>
    %17 = tpu.matmul %15, %16, %cst_14 {dimension_numbers = #tpu.dot_dimension_numbers<[1], [0], [0], [1], [0, 0, 1, 1], [], []>} : vector<16x96xf32>, vector<96x128xf32>, vector<16x128xf32> -> vector<16x128xf32>
    %c0_15 = arith.constant 0 : index
    %c0_16 = arith.constant 0 : index
    %18 = vector.load %arg9[%c0_15, %c0_16] : memref<1x128xf32, #tpu.memory_space<vmem>>, vector<1x128xf32>
    %19 = vector.broadcast %18 : vector<1x128xf32> to vector<16x128xf32>
    %20 = arith.addf %17, %19 : vector<16x128xf32>
    %c0_17 = arith.constant 0 : index
    %c0_18 = arith.constant 0 : index
    %21 = vector.load %arg10[%c0_17, %c0_18] : memref<16x128xf32, #tpu.memory_space<vmem>>, vector<16x128xf32>
    tpu.vector_store %arg10[%c0_17, %c0_18], %20 {strides = array<i32>} : memref<16x128xf32, #tpu.memory_space<vmem>>, vector<16x128xf32>,
    %c0_19 = arith.constant 0 : index
    %c0_20 = arith.constant 0 : index
    %22 = vector.load %arg3[%c0_19, %c0_20] : memref<128x2xf32, #tpu.memory_space<vmem>>, vector<128x2xf32>
    %cst_21 = arith.constant dense<0.000000e+00> : vector<16x2xf32>
    %23 = tpu.matmul %20, %22, %cst_21 {dimension_numbers = #tpu.dot_dimension_numbers<[1], [0], [0], [1], [0, 0, 1, 1], [], []>} : vector<16x128xf32>, vector<128x2xf32>, vector<16x2xf32> -> vector<16x2xf32>
    %c0_22 = arith.constant 0 : index
    %c0_23 = arith.constant 0 : index
    %24 = vector.load %arg1[%c0_22, %c0_23] : memref<16x1xi32, #tpu.memory_space<vmem>>, vector<16x1xi32>
    %25 = tpu.iota {dimensions = array<i32: 1>} : vector<16x2xi32>
    %26 = vector.broadcast %24 : vector<16x1xi32> to vector<16x2xi32>
    %27 = arith.cmpi eq, %25, %26 : vector<16x2xi32>
    %c0_i32 = arith.constant 0 : i32
    %28 = vector.broadcast %c0_i32 : i32 to vector<16x1xi32>
    %29 = arith.cmpi sge, %24, %28 : vector<16x1xi32>
    %cst_24 = arith.constant 0.000000e+00 : f32
    %30 = vector.broadcast %cst_24 : f32 to vector<16x2xf32>
    %31 = arith.subf %30, %23 : vector<16x2xf32>
    %cst_25 = arith.constant 0.000000e+00 : f32
    %32 = vector.broadcast %cst_25 : f32 to vector<16x2xf32>
    %33 = arith.maximumf %31, %32 : vector<16x2xf32>
    %34 = math.absf %23 : vector<16x2xf32>
    %cst_26 = arith.constant 0.000000e+00 : f32
    %35 = vector.broadcast %cst_26 : f32 to vector<16x2xf32>
    %36 = arith.subf %35, %34 : vector<16x2xf32>
    %37 = math.exp %36 : vector<16x2xf32>
    %38 = math.log1p %37 : vector<16x2xf32>
    %39 = arith.addf %33, %38 : vector<16x2xf32>
    %cst_27 = arith.constant 0.693147182 : f32
    %40 = vector.broadcast %cst_27 : f32 to vector<16x2xf32>
    %41 = arith.subf %39, %40 : vector<16x2xf32>
    %cst_28 = arith.constant 6.250000e-02 : f32
    %42 = vector.broadcast %cst_28 : f32 to vector<16x2xf32>
    %43 = arith.mulf %41, %42 : vector<16x2xf32>
    %44 = arith.addf %39, %23 : vector<16x2xf32>
    %cst_29 = arith.constant 0.693147182 : f32
    %45 = vector.broadcast %cst_29 : f32 to vector<16x2xf32>
    %46 = arith.subf %44, %45 : vector<16x2xf32>
    %cst_30 = arith.constant 6.250000e-02 : f32
    %47 = vector.broadcast %cst_30 : f32 to vector<16x2xf32>
    %48 = arith.mulf %46, %47 : vector<16x2xf32>
    %49 = arith.select %27, %43, %48 : vector<16x2xi1>, vector<16x2xf32>
    %cst_31 = arith.constant 0.000000e+00 : f32
    %50 = vector.shape_cast %29 : vector<16x1xi1> to vector<16x1xi1>
    %51 = vector.broadcast %50 : vector<16x1xi1> to vector<16x2xi1>
    %52 = vector.broadcast %cst_31 : f32 to vector<16x2xf32>
    %53 = arith.select %51, %49, %52 : vector<16x2xi1>, vector<16x2xf32>
    %54 = vector.shape_cast %53 : vector<16x2xf32> to vector<1x16x2xf32>
    %cst_32 = arith.constant dense<0.000000e+00> : vector<1xf32>
    %55 = vector.multi_reduction <add>, %54, %cst_32 [1, 2] : vector<1x16x2xf32> to vector<1xf32>
    %56 = vector.shape_cast %55 : vector<1xf32> to vector<1x1x1xf32>
    %57 = vector.extract %56[0, 0, 0] : f32 from vector<1x1x1xf32>
    %58 = vector.broadcast %57 : f32 to vector<8x128xf32>
    %c0_33 = arith.constant 0 : index
    %c0_34 = arith.constant 0 : index
    %59 = vector.load %arg11[%c0_33, %c0_34] : memref<8x128xf32, #tpu.memory_space<vmem>>, vector<8x128xf32>
    tpu.vector_store %arg11[%c0_33, %c0_34], %58 {strides = array<i32>} : memref<8x128xf32, #tpu.memory_space<vmem>>, vector<8x128xf32>,
    return
  }
  func.func @transform_0(%arg0: i32) -> (i32, i32) {
    %c0_i32 = arith.constant 0 : i32
    %c0_i32_0 = arith.constant 0 : i32
    return %arg0, %c0_i32 : i32, i32
  }
  func.func @transform_1(%arg0: i32) -> (i32, i32) {
    %c0_i32 = arith.constant 0 : i32
    %c0_i32_0 = arith.constant 0 : i32
    return %arg0, %c0_i32 : i32, i32
  }
  func.func @transform_2(%arg0: i32) -> (i32, i32) {
    %c0_i32 = arith.constant 0 : i32
    %c0_i32_0 = arith.constant 0 : i32
    %c0_i32_1 = arith.constant 0 : i32
    return %c0_i32, %c0_i32_0 : i32, i32
  }
  func.func @transform_3(%arg0: i32) -> (i32, i32) {
    %c0_i32 = arith.constant 0 : i32
    %c0_i32_0 = arith.constant 0 : i32
    %c0_i32_1 = arith.constant 0 : i32
    return %c0_i32, %c0_i32_0 : i32, i32
  }
  func.func @transform_4(%arg0: i32) -> (i32, i32) {
    %c0_i32 = arith.constant 0 : i32
    %c0_i32_0 = arith.constant 0 : i32
    %c0_i32_1 = arith.constant 0 : i32
    return %c0_i32, %c0_i32_0 : i32, i32
  }
  func.func @transform_5(%arg0: i32) -> (i32, i32) {
    %c0_i32 = arith.constant 0 : i32
    %c0_i32_0 = arith.constant 0 : i32
    %c0_i32_1 = arith.constant 0 : i32
    return %c0_i32, %c0_i32_0 : i32, i32
  }
  func.func @transform_6(%arg0: i32) -> (i32, i32) {
    %c0_i32 = arith.constant 0 : i32
    %c0_i32_0 = arith.constant 0 : i32
    %c0_i32_1 = arith.constant 0 : i32
    return %c0_i32, %c0_i32_0 : i32, i32
  }
  func.func @transform_7(%arg0: i32) -> (i32, i32) {
    %c0_i32 = arith.constant 0 : i32
    %c0_i32_0 = arith.constant 0 : i32
    %c0_i32_1 = arith.constant 0 : i32
    return %c0_i32, %c0_i32_0 : i32, i32
  }
  func.func @transform_8(%arg0: i32) -> (i32, i32) {
    %c0_i32 = arith.constant 0 : i32
    %c0_i32_0 = arith.constant 0 : i32
    %c0_i32_1 = arith.constant 0 : i32
    return %c0_i32, %c0_i32_0 : i32, i32
  }
  func.func @transform_9(%arg0: i32) -> (i32, i32) {
    %c0_i32 = arith.constant 0 : i32
    %c0_i32_0 = arith.constant 0 : i32
    return %arg0, %c0_i32 : i32, i32
  }
  func.func @transform_10(%arg0: i32) -> (i32, i32) {
    %c0_i32 = arith.constant 0 : i32
    %c0_i32_0 = arith.constant 0 : i32
    return %arg0, %c0_i32 : i32, i32
  }
}

</mosaic_0001>

<llo_original>
// kernel: tpu_custom_call.1
$region0: #{tpu_custom_call.1}
  #allocation0 [shape = 'u32[]', space=smem, size = 0x4, offset = 0x4, fixed_abs, tag = 'smem constant byte address 0x4 - core index']
  #allocation1 [shape = 'u32[72,128]{1,0:T(1,128)}', space=vmem, size = 0x9000, scoped, tag = 'internal scratch']
  %s0 = inlined_call_operand.vmem [shape: s32[16,1], index: 0, kind: input, shape index: {}]
  %s1 = inlined_call_operand.vmem [shape: f32[16,64], index: 1, kind: input, shape index: {}]
  %s2 = inlined_call_operand.vmem [shape: f32[128,2], index: 2, kind: input, shape index: {}]
  %s3 = inlined_call_operand.vmem [shape: f32[64,32], index: 3, kind: input, shape index: {}]
  %s4 = inlined_call_operand.vmem [shape: f32[1,32], index: 4, kind: input, shape index: {}]
  %s5 = inlined_call_operand.vmem [shape: f32[32,32], index: 5, kind: input, shape index: {}]
  %s6 = inlined_call_operand.vmem [shape: f32[1,32], index: 6, kind: input, shape index: {}]
  %s7 = inlined_call_operand.vmem [shape: f32[96,128], index: 7, kind: input, shape index: {}]
  %s8 = inlined_call_operand.vmem [shape: f32[1,128], index: 8, kind: input, shape index: {}]
  %s9 = inlined_call_operand.hbm [shape: f32[16,128], index: 9, kind: output, shape index: {0}]
  %s10 = inlined_call_operand.hbm [shape: f32[8,128], index: 10, kind: output, shape index: {1}]
  %11 = xla_tuple %s9, %s10
  %s12 = sld [smem:[#allocation0]]
  $region54: #{tpu_custom_call.1} parent=0
    _
  %s14 = ssub.s32 1, %s12
  %s15 = scalar_select 0, %s14, %s12
  $region1: #{tpu_custom_call.1} parent=0
    #allocation2 [shape = 'u8[8192]{0}', space=vmem, size = 0x2000, scoped, tag = 'output window, operand 0, single buffered']
    #allocation3 [shape = 's32[1]{0}', space=sflag, size = 0x4, scoped, tag = 'scoped memory for tpu_custom_call.1']
    #allocation4 [shape = 'u8[4096]{0}', space=vmem, size = 0x1000, scoped, tag = 'output window, operand 1, single buffered']
    #allocation5 [shape = 's32[1]{0}', space=sflag, size = 0x4, scoped, tag = 'scoped memory for tpu_custom_call.1']
    %16 = vsyncpa [#allocation3], 0
    %17 = vsyncpa [#allocation5], 0
    // Predicated region
    $region2: #{tpu_custom_call.1} parent=1 // pred_check
      _
    $region3: #{tpu_custom_call.1} parent=1 // pred_check_branch
      %19 = sbr.rel (0) target = $region5
    $region4: #{tpu_custom_call.1} parent=1 // pred_region
      _
    $region5: #{tpu_custom_call.1} parent=1 // pred_fallthru
      _
    // Predicated region
    $region6: #{tpu_custom_call.1} parent=1 // pred_check
      _
    $region7: #{tpu_custom_call.1} parent=1 // pred_check_branch
      %21 = sbr.rel (0) target = $region9
    $region8: #{tpu_custom_call.1} parent=1 // pred_region
      _
    $region9: #{tpu_custom_call.1} parent=1 // pred_fallthru
      _
    // Predicated region
    $region10: #{tpu_custom_call.1} parent=1 // pred_check
      _
    $region11: #{tpu_custom_call.1} parent=1 // pred_check_branch
      %23 = sbr.rel (0) target = $region13
    $region12: #{tpu_custom_call.1} parent=1 // pred_region
      _
    $region13: #{tpu_custom_call.1} parent=1 // pred_fallthru
      _
    // Predicated region
    $region14: #{tpu_custom_call.1} parent=1 // pred_check
      _
    $region15: #{tpu_custom_call.1} parent=1 // pred_check_branch
      %25 = sbr.rel (0) target = $region17
    $region16: #{tpu_custom_call.1} parent=1 // pred_region
      _
    $region17: #{tpu_custom_call.1} parent=1 // pred_fallthru
      _
    // Predicated region
    $region18: #{tpu_custom_call.1} parent=1 // pred_check
      _
    $region19: #{tpu_custom_call.1} parent=1 // pred_check_branch
      %27 = sbr.rel (0) target = $region21
    $region20: #{tpu_custom_call.1} parent=1 // pred_region
      _
    $region21: #{tpu_custom_call.1} parent=1 // pred_fallthru
      _
    // Predicated region
    $region22: #{tpu_custom_call.1} parent=1 // pred_check
      _
    $region23: #{tpu_custom_call.1} parent=1 // pred_check_branch
      %29 = sbr.rel (0) target = $region25
    $region24: #{tpu_custom_call.1} parent=1 // pred_region
      _
    $region25: #{tpu_custom_call.1} parent=1 // pred_fallthru
      _
    // Predicated region
    $region26: #{tpu_custom_call.1} parent=1 // pred_check
      _
    $region27: #{tpu_custom_call.1} parent=1 // pred_check_branch
      %31 = sbr.rel (0) target = $region29
    $region28: #{tpu_custom_call.1} parent=1 // pred_region
      _
    $region29: #{tpu_custom_call.1} parent=1 // pred_fallthru
      _
    // Predicated region
    $region30: #{tpu_custom_call.1} parent=1 // pred_check
      _
    $region31: #{tpu_custom_call.1} parent=1 // pred_check_branch
      %33 = sbr.rel (0) target = $region33
    $region32: #{tpu_custom_call.1} parent=1 // pred_region
      _
    $region33: #{tpu_custom_call.1} parent=1 // pred_fallthru
      _
    // Predicated region
    $region34: #{tpu_custom_call.1} parent=1 // pred_check
      _
    $region35: #{tpu_custom_call.1} parent=1 // pred_check_branch
      %35 = sbr.rel (0) target = $region37
    $region36: #{tpu_custom_call.1} parent=1 // pred_region
      _
    $region37: #{tpu_custom_call.1} parent=1 // pred_fallthru
      _
    %v36 = vld [vmem:[%s1] sm:$0xff]
    %v37 = vld [vmem:[%s1 + $0x8] sm:$0xff]
    %v38 = vld [vmem:[%s3] sm:$0xff]
    %v39 = vld [vmem:[%s3 + $0x8] sm:$0xff]
    %v40 = vld [vmem:[%s3 + $0x10] sm:$0xff]
    %v41 = vld [vmem:[%s3 + $0x18] sm:$0xff]
    %v42 = vld [vmem:[%s3 + $0x20] sm:$0xff]
    %v43 = vld [vmem:[%s3 + $0x28] sm:$0xff]
    %v44 = vld [vmem:[%s3 + $0x30] sm:$0xff]
    %v45 = vld [vmem:[%s3 + $0x38] sm:$0xff]
    %v46 = vld [vmem:[%s4] sm:$0x1]
    %v48 = vperm.slane %v46, 0
    %vm50 = vcmask 523264
    %v52 = vsel %vm50, %v36, 0
    %v55 = vsel %vm50, %v37, 0
    %57 = vmatpush.msra.mxu0 0.0
    %58 = vmatpush.msra.mxu0 0.0
    %59 = vmatpush.msra.mxu0 0.0
    %60 = vmatpush.msra.mxu0 0.0
    %61 = vmatpush.msra.mxu0 0.0
    %62 = vmatpush.msra.mxu0 0.0
    %63 = vmatpush.msra.mxu0 0.0
    %64 = vmatpush.msra.mxu0 0.0
    %65 = vmatpush.msra.mxu0 %v45
    %66 = vmatpush.msra.mxu0 %v44
    %67 = vmatpush.msra.mxu0 %v43
    %68 = vmatpush.msra.mxu0 %v42
    %69 = vmatpush.msra.mxu0 %v41
    %70 = vmatpush.msra.mxu0 %v40
    %71 = vmatpush.msra.mxu0 %v39
    %72 = vmatpush.msra.mxu0 %v38
    %73 = vmatmul.f32.gmra.mxu0 %v52
    %v74 = vpop.f32.mrf.mxu0
    %v75 = vadd.f32 %v48, %v74
    %76 = vmatmul.f32.gmra.mxu0 %v55
    %v77 = vpop.f32.mrf.mxu0
    %v78 = vadd.f32 %v48, %v77
    %79 = vdwg.mxu0
    %v80 = vmax.f32 %v75, 0.0
    %v81 = vmax.f32 %v78, 0.0
    %v82 = vld [vmem:[%s5] sm:$0xff]
    %v83 = vld [vmem:[%s5 + $0x8] sm:$0xff]
    %v84 = vld [vmem:[%s5 + $0x10] sm:$0xff]
    %v85 = vld [vmem:[%s5 + $0x18] sm:$0xff]
    %v86 = vld [vmem:[%s6] sm:$0x1]
    %v88 = vperm.slane %v86, 0
    %vm90 = vcmask 261120
    %v92 = vsel %vm90, %v80, 0
    %v95 = vsel %vm90, %v81, 0
    %97 = vmatpush.msra.mxu0 0.0
    %98 = vmatpush.msra.mxu0 0.0
    %99 = vmatpush.msra.mxu0 0.0
    %100 = vmatpush.msra.mxu0 0.0
    %101 = vmatpush.msra.mxu0 0.0
    %102 = vmatpush.msra.mxu0 0.0
    %103 = vmatpush.msra.mxu0 0.0
    %104 = vmatpush.msra.mxu0 0.0
    %105 = vmatpush.msra.mxu0 0.0
    %106 = vmatpush.msra.mxu0 0.0
    %107 = vmatpush.msra.mxu0 0.0
    %108 = vmatpush.msra.mxu0 0.0
    %109 = vmatpush.msra.mxu0 %v85
    %110 = vmatpush.msra.mxu0 %v84
    %111 = vmatpush.msra.mxu0 %v83
    %112 = vmatpush.msra.mxu0 %v82
    %113 = vmatmul.f32.gmra.mxu0 %v92
    %v114 = vpop.f32.mrf.mxu0
    %v115 = vadd.f32 %v88, %v114
    %116 = vmatmul.f32.gmra.mxu0 %v95
    %v117 = vpop.f32.mrf.mxu0
    %v118 = vadd.f32 %v88, %v117
    %119 = vdwg.mxu0
    %v120 = vmax.f32 %v115, 0.0
    %v121 = vmax.f32 %v118, 0.0
    %122 = vrot.lane.b32.xlu0 %v36, 32
    %v123 = vpop.permute.xlu0 %122
    %124 = vrot.lane.b32.xlu0 %v37, 32
    %v125 = vpop.permute.xlu0 %124
    %v128 = vsel %vm90, %v120, %v123
    %v129 = vsel %vm90, %v121, %v125
    %v130 = vld [vmem:[%s7] sm:$0xff]
    %v131 = vld [vmem:[%s7 + $0x8] sm:$0xff]
    %v132 = vld [vmem:[%s7 + $0x10] sm:$0xff]
    %v133 = vld [vmem:[%s7 + $0x18] sm:$0xff]
    %v134 = vld [vmem:[%s7 + $0x20] sm:$0xff]
    %v135 = vld [vmem:[%s7 + $0x28] sm:$0xff]
    %v136 = vld [vmem:[%s7 + $0x30] sm:$0xff]
    %v137 = vld [vmem:[%s7 + $0x38] sm:$0xff]
    %v138 = vld [vmem:[%s7 + $0x40] sm:$0xff]
    %v139 = vld [vmem:[%s7 + $0x48] sm:$0xff]
    %v140 = vld [vmem:[%s7 + $0x50] sm:$0xff]
    %v141 = vld [vmem:[%s7 + $0x58] sm:$0xff]
    %v142 = vld [vmem:[%s8] sm:$0x1]
    %v144 = vperm.slane %v142, 0
    %vm146 = vcmask 785408
    %v148 = vsel %vm146, %v128, 0
    %v151 = vsel %vm146, %v129, 0
    %153 = vmatpush.msra.mxu0 0.0
    %154 = vmatpush.msra.mxu0 0.0
    %155 = vmatpush.msra.mxu0 0.0
    %156 = vmatpush.msra.mxu0 0.0
    %157 = vmatpush.msra.mxu0 %v141
    %158 = vmatpush.msra.mxu0 %v140
    %159 = vmatpush.msra.mxu0 %v139
    %160 = vmatpush.msra.mxu0 %v138
    %161 = vmatpush.msra.mxu0 %v137
    %162 = vmatpush.msra.mxu0 %v136
    %163 = vmatpush.msra.mxu0 %v135
    %164 = vmatpush.msra.mxu0 %v134
    %165 = vmatpush.msra.mxu0 %v133
    %166 = vmatpush.msra.mxu0 %v132
    %167 = vmatpush.msra.mxu0 %v131
    %168 = vmatpush.msra.mxu0 %v130
    %169 = vmatmul.f32.gmra.mxu0 %v148
    %v170 = vpop.f32.mrf.mxu0
    %v171 = vadd.f32 %v144, %v170
    %172 = vmatmul.f32.gmra.mxu0 %v151
    %v173 = vpop.f32.mrf.mxu0
    %v174 = vadd.f32 %v144, %v173
    %175 = vdwg.mxu0
    %176 = vst [vmem:[#allocation2] sm:$0xff] %v171
    %177 = vst [vmem:[#allocation2 + $0x8] sm:$0xff] %v174
    %v178 = vld [vmem:[%s2] sm:$0xff]
    %v179 = vld [vmem:[%s2 + $0x8] sm:$0xff]
    %v180 = vld [vmem:[%s2 + $0x10] sm:$0xff]
    %v181 = vld [vmem:[%s2 + $0x18] sm:$0xff]
    %v182 = vld [vmem:[%s2 + $0x20] sm:$0xff]
    %v183 = vld [vmem:[%s2 + $0x28] sm:$0xff]
    %v184 = vld [vmem:[%s2 + $0x30] sm:$0xff]
    %v185 = vld [vmem:[%s2 + $0x38] sm:$0xff]
    %v186 = vld [vmem:[%s2 + $0x40] sm:$0xff]
    %v187 = vld [vmem:[%s2 + $0x48] sm:$0xff]
    %v188 = vld [vmem:[%s2 + $0x50] sm:$0xff]
    %v189 = vld [vmem:[%s2 + $0x58] sm:$0xff]
    %v190 = vld [vmem:[%s2 + $0x60] sm:$0xff]
    %v191 = vld [vmem:[%s2 + $0x68] sm:$0xff]
    %v192 = vld [vmem:[%s2 + $0x70] sm:$0xff]
    %v193 = vld [vmem:[%s2 + $0x78] sm:$0xff]
    %194 = vmatpush.msra.mxu0 %v193
    %195 = vmatpush.msra.mxu0 %v192
    %196 = vmatpush.msra.mxu0 %v191
    %197 = vmatpush.msra.mxu0 %v190
    %198 = vmatpush.msra.mxu0 %v189
    %199 = vmatpush.msra.mxu0 %v188
    %200 = vmatpush.msra.mxu0 %v187
    %201 = vmatpush.msra.mxu0 %v186
    %202 = vmatpush.msra.mxu0 %v185
    %203 = vmatpush.msra.mxu0 %v184
    %204 = vmatpush.msra.mxu0 %v183
    %205 = vmatpush.msra.mxu0 %v182
    %206 = vmatpush.msra.mxu0 %v181
    %207 = vmatpush.msra.mxu0 %v180
    %208 = vmatpush.msra.mxu0 %v179
    %209 = vmatpush.msra.mxu0 %v178
    %210 = vmatmul.f32.gmra.mxu0 %v171
    %v211 = vpop.f32.mrf.mxu0
    %v212 = vadd.f32 0.0, %v211
    %213 = vmatmul.f32.gmra.mxu0 %v174
    %v214 = vpop.f32.mrf.mxu0
    %v215 = vadd.f32 0.0, %v214
    %216 = vdwg.mxu0
    %v217 = vld [vmem:[%s0] sm:$0xff]
    %v218 = vld [vmem:[%s0 + $0x8] sm:$0xff]
    %v219 = vlaneseq
    %v220 = vand.u32 %v219, 127
    %221 = vset.pattern.permute.xlu0 0
    %222 = vperm.xlu0 %221, %v217
    %v223 = vpop.permute.xlu0 %222
    %224 = vset.pattern.permute.xlu0 0
    %225 = vperm.xlu0 %224, %v218
    %v226 = vpop.permute.xlu0 %225
    %vm227 = vcmp.eq.s32.totalorder %v220, %v223
    %vm228 = vcmp.eq.s32.totalorder %v220, %v226
    %vm229 = vcmp.ge.s32.totalorder %v217, 0
    %vm230 = vcmp.ge.s32.totalorder %v218, 0
    %v231 = vsub.f32 0.0, %v212
    %v232 = vsub.f32 0.0, %v215
    %v233 = vmax.f32 %v231, 0.0
    %v234 = vmax.f32 %v232, 0.0
    %v235 = vand.u32 2147483647, %v212
    %v236 = vand.u32 2147483647, %v215
    %v237 = vsub.f32 0.0, %v235
    %v238 = vsub.f32 0.0, %v236
    %v239 = vmul.f32 %v237, 1.442695
    %v240 = vpow.pop %v239
    %v241 = vmul.f32 %v238, 1.442695
    %v242 = vpow.pop %v241
    %v243 = vadd.f32 %v240, 1.0
    %v244 = vlog2.pop %v243
    %v245 = vmul.f32 %v244, 0.6931472
    %v246 = vmul.f32 -0.5, %v240
    %v247 = vadd.f32 %v246, 1.0
    %v248 = vmul.f32 %v247, %v240
    %v249 = vand.u32 2147483647, %v240
    %vm250 = vcmp.lt.f32.partialorder %v249, 0.0004427343
    %v251 = vsel %vm250, %v248, %v245
    %v252 = vadd.f32 %v242, 1.0
    %v253 = vlog2.pop %v252
    %v254 = vmul.f32 %v253, 0.6931472
    %v255 = vmul.f32 -0.5, %v242
    %v256 = vadd.f32 %v255, 1.0
    %v257 = vmul.f32 %v256, %v242
    %v258 = vand.u32 2147483647, %v242
    %vm259 = vcmp.lt.f32.partialorder %v258, 0.0004427343
    %v260 = vsel %vm259, %v257, %v254
    %v261 = vadd.f32 %v233, %v251
    %v262 = vadd.f32 %v234, %v260
    %v263 = vsub.f32 %v261, 0.6931472
    %v264 = vsub.f32 %v262, 0.6931472
    %v265 = vmul.f32 %v263, 0.0625
    %v266 = vmul.f32 %v264, 0.0625
    %v267 = vadd.f32 %v261, %v212
    %v268 = vadd.f32 %v262, %v215
    %v269 = vsub.f32 %v267, 0.6931472
    %v270 = vsub.f32 %v268, 0.6931472
    %v271 = vmul.f32 %v269, 0.0625
    %v272 = vmul.f32 %v270, 0.0625
    %v273 = vsel %vm227, %v265, %v271
    %v274 = vsel %vm228, %v266, %v272
    %v275 = vsel %vm229, 1, 0
    %v276 = vsel %vm230, 1, 0
    %277 = vset.pattern.permute.xlu0 0
    %278 = vperm.xlu0 %277, %v275
    %v279 = vpop.permute.xlu0 %278
    %280 = vset.pattern.permute.xlu0 0
    %281 = vperm.xlu0 %280, %v276
    %v282 = vpop.permute.xlu0 %281
    %vm283 = vcmp.eq.s32.totalorder %v279, 1
    %vm284 = vcmp.eq.s32.totalorder %v282, 1
    %v285 = vsel %vm283, %v273, 0.0
    %v286 = vsel %vm284, %v274, 0.0
    %vm287 = vcmask 15360
    %v288 = vsel %vm287, %v285, 0.0
    %v289 = vsel %vm287, %v286, 0.0
    %v290 = vadd.f32 %v288, %v289
    %291 = vadd.xlane.f32.xlu0 %v290
    %v292 = vpop.xlane.xlu0 %291
    %v293 = vrot.slane %v292, 4
    %v294 = vadd.f32 %v292, %v293
    %v295 = vrot.slane %v294, 2
    %v296 = vadd.f32 %v294, %v295
    %v297 = vrot.slane %v296, 1
    %v298 = vadd.f32 %v296, %v297
    %s299 = vtos %v298
    %v300 = vstv %s299
    %301 = vst [vmem:[#allocation4] sm:$0xff] %v300
    // Predicated region
    $region38: #{tpu_custom_call.1} parent=1 // pred_check
      _
    $region39: #{tpu_custom_call.1} parent=1 // pred_check_branch
      %303 = sbr.rel (0) target = $region41
    $region40: #{tpu_custom_call.1} parent=1 // pred_region
      %305 = vsyncadd [#allocation3], 0
      %s306 = sshll.u32 [#allocation2], 4
      %s307 = int_to_ptr.vmem [resolvable:$true] %s306
      %s308 = sshll.u32 %s9, 4
      %s309 = int_to_ptr.hbm [resolvable:$true] %s308
      %314 = dma.vmem_to_hbm [thread:$0]  %s307, 256, %s309, [#allocation3], 128, 128, 8
    $region41: #{tpu_custom_call.1} parent=1 // pred_fallthru
      _
    // Predicated region
    $region42: #{tpu_custom_call.1} parent=1 // pred_check
      _
    $region43: #{tpu_custom_call.1} parent=1 // pred_check_branch
      %316 = sbr.rel (0) target = $region45
    $region44: #{tpu_custom_call.1} parent=1 // pred_region
      %318 = vsyncadd [#allocation5], 0
      %s320 = sshll.u32 [#allocation4], 4
      %s321 = int_to_ptr.vmem [resolvable:$true] %s320
      %s322 = sshll.u32 %s10, 4
      %s323 = int_to_ptr.hbm [resolvable:$true] %s322
      %325 = dma.vmem_to_hbm [thread:$0]  %s321, 128, %s323, [#allocation5]
    $region45: #{tpu_custom_call.1} parent=1 // pred_fallthru
      _
    // Predicated region
    $region46: #{tpu_custom_call.1} parent=1 // pred_check
      _
    $region47: #{tpu_custom_call.1} parent=1 // pred_check_branch
      %327 = sbr.rel (0) target = $region49
    $region48: #{tpu_custom_call.1} parent=1 // pred_region
      %329 = dma.done [#allocation3], 256
    $region49: #{tpu_custom_call.1} parent=1 // pred_fallthru
      _
    // Predicated region
    $region50: #{tpu_custom_call.1} parent=1 // pred_check
      _
    $region51: #{tpu_custom_call.1} parent=1 // pred_check_branch
      %331 = sbr.rel (0) target = $region53
    $region52: #{tpu_custom_call.1} parent=1 // pred_region
      %333 = dma.done [#allocation5], 128
    $region53: #{tpu_custom_call.1} parent=1 // pred_fallthru
      _
    %334 = vsyncpa [#allocation3], 1
    %335 = vsyncpa [#allocation5], 1

</llo_original>
